<compile_context>
chip_gen: v7x
topology: tpu7x:2x2x1
jax: 0.10.0
libtpu: 0.0.40
codegen_flags: <defaults>
</compile_context>

<pallas_src>
import functools

import jax
import jax.numpy as jnp
from jax import lax
from jax.experimental import pallas as pl
from jax.experimental.pallas import tpu as pltpu

ACT = jnp.bfloat16   # activation dtype in HBM (f32 accumulation inside kernels)


# ----------------------------------------------------------------------------
# Pallas kernel 1: tiled matmul, bf16 operands / f32 accumulation
# ----------------------------------------------------------------------------
def _matmul_kernel(a_ref, b_ref, o_ref, acc_ref, *, K, tk):
    kid = pl.program_id(2)

    @pl.when(kid == 0)
    def _():
        acc_ref[...] = jnp.zeros_like(acc_ref)

    a = a_ref[...]
    if K % tk != 0:  # trace-time check: mask the K remainder (no HBM padding)
        col = lax.broadcasted_iota(jnp.int32, a.shape, 1) + kid * tk
        a = jnp.where(col < K, a, jnp.zeros_like(a))
    acc_ref[...] += jnp.dot(a, b_ref[...], preferred_element_type=jnp.float32)

    @pl.when(kid == pl.num_programs(2) - 1)
    def _():
        o_ref[...] = acc_ref[...].astype(o_ref.dtype)


def pallas_matmul(a, b, out_dtype=None):
    """(M, K) @ (K, N) -> (M, N); bf16 on the MXU, f32 accumulator in VMEM.

    No padded HBM copies: edge blocks rely on Pallas block clamping (garbage
    rows/cols only feed discarded outputs), K remainders are masked in-kernel.
    256-wide tiles feed the 2x256 MXU on v6e/v7x; small dims use full blocks.
    """
    M, K = a.shape
    K2, N = b.shape
    assert K == K2
    out_dtype = out_dtype or ACT
    a = a.astype(jnp.bfloat16)
    b = b.astype(jnp.bfloat16)
    tm = 256 if M > 256 else M
    tn = 256 if N > 256 else N
    tk = 512 if K > 512 else K
    grid = (pl.cdiv(M, tm), pl.cdiv(N, tn), pl.cdiv(K, tk))
    return pl.pallas_call(
        functools.partial(_matmul_kernel, K=K, tk=tk),
        grid=grid,
        in_specs=[pl.BlockSpec((tm, tk), lambda i, j, k: (i, k)),
                  pl.BlockSpec((tk, tn), lambda i, j, k: (k, j))],
        out_specs=pl.BlockSpec((tm, tn), lambda i, j, k: (i, j)),
        out_shape=jax.ShapeDtypeStruct((M, N), out_dtype),
        scratch_shapes=[pltpu.VMEM((tm, tn), jnp.float32)],
        compiler_params=pltpu.CompilerParams(
            dimension_semantics=("parallel", "parallel", "arbitrary"),
            vmem_limit_bytes=32 * 1024 * 1024),
    )(a, b)


def linear3d(x, w, b=None):
    """x: (..., in) @ w: (in, out), bias optional."""
    shp = x.shape
    y = pallas_matmul(x.reshape(-1, shp[-1]), w)
    y = y.reshape(shp[:-1] + (w.shape[1],))
    if b is not None:
        y = y + b.astype(y.dtype)
    return y


# ----------------------------------------------------------------------------
# Pallas kernel 2: Conv1d as an in-kernel k-tap matmul (plain + fused variants)
# ----------------------------------------------------------------------------
def _conv1d_kernel(xp_ref, w_ref, b_ref, o_ref, *, k, L):
    xp = xp_ref[0].astype(jnp.bfloat16)            # (L + k - 1, Cin)
    acc = jnp.zeros((L, w_ref.shape[2]), jnp.float32)
    for j in range(k):                             # k-tap accumulated matmul
        acc = acc + jnp.dot(xp[j:j + L, :], w_ref[j],
                            preferred_element_type=jnp.float32)
    o_ref[0] = (acc + b_ref[...]).astype(o_ref.dtype)


def conv1d_same(x, w, b):
    """PyTorch Conv1d with padding=k//2 (odd k only), channels-last.
    x: (B, L, Cin); w: (k, Cin, Cout) pre-transposed once at init; b: (1, Cout)."""
    B, L, Cin = x.shape
    k, _, Cout = w.shape
    pad = k // 2
    xp = jnp.pad(x, ((0, 0), (pad, pad), (0, 0)))  # single +k-1 row pad, no im2col
    return pl.pallas_call(
        functools.partial(_conv1d_kernel, k=k, L=L),
        grid=(B,),
        in_specs=[pl.BlockSpec((1, L + 2 * pad, Cin), lambda i: (i, 0, 0)),
                  pl.BlockSpec((k, Cin, Cout), lambda i: (0, 0, 0)),
                  pl.BlockSpec((1, Cout), lambda i: (0, 0))],
        out_specs=pl.BlockSpec((1, L, Cout), lambda i: (i, 0, 0)),
        out_shape=jax.ShapeDtypeStruct((B, L, Cout), x.dtype),
        compiler_params=pltpu.CompilerParams(
            dimension_semantics=("parallel",)),
    )(xp, w.astype(jnp.bfloat16), b)


def _enc_conv_kernel(xp_ref, w_ref, b_ref, g_ref, beta_ref, o_ref,
                     *, k, L, eps=1e-5):
    """Fused layernorm -> same-pad Conv1d(k) -> relu -> residual (one HBM pass)."""
    pad = k // 2
    xp = xp_ref[0].astype(jnp.float32)             # (L + k - 1, C)
    mu = jnp.mean(xp, axis=-1, keepdims=True)      # LN stats in f32
    var = jnp.mean(jnp.square(xp - mu), axis=-1, keepdims=True)
    xn = (xp - mu) * lax.rsqrt(var + eps) * g_ref[...] + beta_ref[...]
    # zero the halo rows so the conv sees zero padding (LN(0) != 0)
    row = lax.broadcasted_iota(jnp.int32, xn.shape, 0)
    xn = jnp.where((row >= pad) & (row < pad + L), xn, 0.0).astype(jnp.bfloat16)
    acc = jnp.zeros((L, w_ref.shape[2]), jnp.float32)
    for j in range(k):
        acc = acc + jnp.dot(xn[j:j + L, :], w_ref[j],
                            preferred_element_type=jnp.float32)
    y = jnp.maximum(acc + b_ref[...], 0.0) + xp[pad:pad + L, :]   # relu + residual
    o_ref[0] = y.astype(o_ref.dtype)


def encoder_conv(x, w, b, g, beta):
    B, L, C = x.shape
    k, _, Cout = w.shape
    pad = k // 2
    xp = jnp.pad(x, ((0, 0), (pad, pad), (0, 0)))
    return pl.pallas_call(
        functools.partial(_enc_conv_kernel, k=k, L=L),
        grid=(B,),
        in_specs=[pl.BlockSpec((1, L + 2 * pad, C), lambda i: (i, 0, 0)),
                  pl.BlockSpec((k, C, Cout), lambda i: (0, 0, 0)),
                  pl.BlockSpec((1, Cout), lambda i: (0, 0)),
                  pl.BlockSpec((1, C), lambda i: (0, 0)),
                  pl.BlockSpec((1, C), lambda i: (0, 0))],
        out_specs=pl.BlockSpec((1, L, Cout), lambda i: (i, 0, 0)),
        out_shape=jax.ShapeDtypeStruct((B, L, Cout), x.dtype),
        compiler_params=pltpu.CompilerParams(
            dimension_semantics=("parallel",)),
    )(xp, w.astype(jnp.bfloat16), b, g, beta)


def encoder_block(x, p):
    # TODO(synk): Encoder_Block source not provided; stand-in = conv_num x
    # [layernorm -> same-pad Conv1d(k) -> relu -> residual], fused per conv.
    for c in p['convs']:
        x = encoder_conv(x, c['w'], c['b'], c['ln_g'], c['ln_b'])
    return x


# ----------------------------------------------------------------------------
# Pallas kernel 3: fused context-query attention (per batch element)
# ----------------------------------------------------------------------------
def _cq_attention_kernel(c_ref, q_ref, w_ref, o_ref):
    c = c_ref[0]                                   # (Lc, d) bf16
    q = q_ref[0]                                   # (Lq, d) bf16
    cf = c.astype(jnp.float32)
    qf = q.astype(jnp.float32)
    w_c = w_ref[0:1, :]                            # (1, d) f32
    w_q = w_ref[1:2, :]
    w_m = w_ref[2:3, :]

    s0 = jnp.sum(cf * w_c, axis=-1, keepdims=True)                      # (Lc, 1)
    s1 = lax.dot_general(w_q.astype(jnp.bfloat16), q,
                         (((1,), (1,)), ((), ())),
                         preferred_element_type=jnp.float32)            # (1, Lq)
    cw = (cf * w_m).astype(jnp.bfloat16)
    s2 = lax.dot_general(cw, q, (((1,), (1,)), ((), ())),
                         preferred_element_type=jnp.float32)            # (Lc, Lq)
    S = s2 + s0 + s1        # scalar bias omitted: softmax-invariant for both axes

    # row softmax over Lq
    m1 = jnp.max(S, axis=-1, keepdims=True)
    e1 = jnp.exp(S - m1)
    S1 = e1 * pl.reciprocal(jnp.sum(e1, axis=-1, keepdims=True), approx=True)
    # column softmax over Lc
    m2 = jnp.max(S, axis=0, keepdims=True)
    e2 = jnp.exp(S - m2)
    S2 = e2 * pl.reciprocal(jnp.sum(e2, axis=0, keepdims=True), approx=True)

    S1b = S1.astype(jnp.bfloat16)
    S2b = S2.astype(jnp.bfloat16)
    A = jnp.dot(S1b, q, preferred_element_type=jnp.float32)             # (Lc, d)
    SS = lax.dot_general(S1b, S2b, (((1,), (1,)), ((), ())),
                         preferred_element_type=jnp.float32)            # (Lc, Lc)
    Bm = jnp.dot(SS.astype(jnp.bfloat16), c,
                 preferred_element_type=jnp.float32)                    # (Lc, d)

    out = jnp.concatenate([cf, A, cf * A, cf * Bm], axis=-1)            # (Lc, 4d)
    o_ref[0] = out.astype(o_ref.dtype)


def cq_attention(C, Q, p):
    """QANet context-query attention, fully fused: output (B, Lc, 4d)."""
    B, Lc, d = C.shape
    Lq = Q.shape[1]
    w = jnp.stack([p['w_c'], p['w_q'], p['w_m']], axis=0)   # (3, d) f32
    return pl.pallas_call(
        _cq_attention_kernel,
        grid=(B,),
        in_specs=[pl.BlockSpec((1, Lc, d), lambda b: (b, 0, 0)),
                  pl.BlockSpec((1, Lq, d), lambda b: (b, 0, 0)),
                  pl.BlockSpec((3, d), lambda b: (0, 0))],
        out_specs=pl.BlockSpec((1, Lc, 4 * d), lambda b: (b, 0, 0)),
        out_shape=jax.ShapeDtypeStruct((B, Lc, 4 * d), C.dtype),
        compiler_params=pltpu.CompilerParams(
            dimension_semantics=("parallel",)),
    )(C, Q, w)


# ----------------------------------------------------------------------------
# Remaining layers (glue / tiny ops stay in plain JAX)
# ----------------------------------------------------------------------------
def emb_wrapper(x, p):
    # TODO(synk): Emb_Wrapper source not provided; stand-in = linear projection
    # (emb_dim -> hidden_size) + `layer_num` highway layers; the gate and
    # transform matmuls are fused into one stacked matmul.
    x = linear3d(x, p['proj_w'], p['proj_b'])
    H = x.shape[-1]
    for hw in p['highway']:
        y = linear3d(x, hw['w_gl'], hw['b_gl'])         # (..., 2H)
        g = jax.nn.sigmoid(y[..., :H])
        t = jax.nn.relu(y[..., H:])
        x = g * t + (1.0 - g) * x
    return x


def bi_gru(x, p, hid):
    """Bidirectional GRU, PyTorch gate ordering [r, z, n], both directions in
    one scan.  NOTE: nn.GRU default batch_first=False, so (as in the original
    code) the recurrence runs over axis 0 of M1; reproduced exactly here."""
    T, N, I = x.shape
    proj = pallas_matmul(x.reshape(T * N, I), p['w_ih_cat'],
                         out_dtype=jnp.float32).reshape(T, N, 6 * hid)
    xi_f = proj[..., :3 * hid] + p['b_ih'][0]
    xi_b = proj[::-1, :, 3 * hid:] + p['b_ih'][1]
    xi = jnp.stack([xi_f, xi_b], axis=1)                  # (T, 2, N, 3h)
    w_hh_t = p['w_hh_t']                                  # (2, hid, 3h)
    b_hh = p['b_hh'][:, None, :]                          # (2, 1, 3h)

    def step(h, xt):
        gh = jnp.einsum('dnh,dhg->dng', h, w_hh_t) + b_hh
        r = jax.nn.sigmoid(xt[..., :hid] + gh[..., :hid])
        z = jax.nn.sigmoid(xt[..., hid:2 * hid] + gh[..., hid:2 * hid])
        n = jnp.tanh(xt[..., 2 * hid:] + r * gh[..., 2 * hid:])
        h2 = (1.0 - z) * n + z * h
        return h2, h2

    h0 = jnp.zeros((2, N, hid), jnp.float32)
    _, ys = lax.scan(step, h0, xi)
    fwd = ys[:, 0]
    bwd = ys[:, 1][::-1]
    return jnp.concatenate([fwd, bwd], axis=-1)           # (T, N, 2h) f32


def pred_layer(Q, M2, a_embedding, ids, p, is_train, is_argmax):
    # TODO(synk): Pred_Layer source not provided; stand-in = attention-pooled
    # passage + mean-pooled question -> projection -> dot with the 3 answer
    # embeddings -> cross-entropy against `ids`.  Tiny; plain XLA.
    Qf = Q.astype(jnp.float32)
    M2f = M2.astype(jnp.float32)
    q_vec = jnp.mean(Qf, axis=1)                                   # (B, 2h)
    att = jax.nn.softmax(jnp.einsum('bld,bd->bl', M2f, q_vec), -1)
    p_vec = jnp.einsum('bl,bld->bd', att, M2f)                     # (B, 2h)
    feat = jnp.concatenate([q_vec, p_vec], axis=-1)                # (B, 4h)
    proj = feat @ p['w'] + p['b']                                  # (B, E)
    scores = jnp.einsum('bke,be->bk', a_embedding.astype(jnp.float32), proj)
    if is_argmax:
        return jnp.argmax(scores, axis=-1)
    if is_train:
        logp = jax.nn.log_softmax(scores, axis=-1)
        return -jnp.mean(jnp.take_along_axis(logp, ids[:, None], axis=-1))
    return scores


# ----------------------------------------------------------------------------
# QAN forward
# ----------------------------------------------------------------------------
def qan_forward(params, query, passage, answer, ids,
                is_train=True, is_argmax=False):
    emb_tbl = params['embedding']
    q_emb = emb_tbl[query].astype(ACT)                            # (B, Lq, E)
    p_emb = emb_tbl[passage].astype(ACT)                          # (B, Lp, E)
    B, _, La = answer.shape
    a_emb = emb_tbl[answer].reshape(B * 3, La, emb_tbl.shape[1]).astype(ACT)

    q_emb = emb_wrapper(q_emb, params['q_emb_wrap'])              # (B, Lq, H)
    p_emb = emb_wrapper(p_emb, params['p_emb_wrap'])              # (B, Lp, H)
    a_emb = emb_wrapper(a_emb, params['a_emb_wrap'])              # (B*3, La, E)

    # answer encoding + attention pooling (N=1 projection: plain XLA, not Pallas)
    a_embedding = encoder_block(a_emb, params['a_encoder'])       # (B*3, La, E)
    a_logits = jnp.einsum('ble,e->bl', a_embedding.astype(jnp.float32),
                          params['a_attention_w'])
    a_score = jax.nn.softmax(a_logits, axis=1)
    a_output = jnp.einsum('bl,ble->be', a_score,
                          a_embedding.astype(jnp.float32))        # (B*3, E)
    a_embedding = a_output.reshape(B, 3, -1)

    # question / passage encoding (dropout p=0 -> identity)
    Q = encoder_block(q_emb, params['q_encoder'])                 # (B, Lq, H)
    P = encoder_block(p_emb, params['d_encoder'])                 # (B, Lp, H)

    q_p_att = cq_attention(P, Q, params['cq_att'])                # (B, Lp, 4H)
    M1 = conv1d_same(q_p_att, params['qp_projector']['w'],
                     params['qp_projector']['b'])                 # (B, Lp, 2H)
    hid = params['gru']['w_hh_t'].shape[1]
    M2 = bi_gru(M1, params['gru'], hid)                           # (B, Lp, 2H)
    Qp = conv1d_same(Q, params['q_conv_projector']['w'],
                     params['q_conv_projector']['b'])             # (B, Lq, 2H)
    return pred_layer(Qp, M2, a_embedding, ids, params['pred'],
                      is_train, is_argmax)


# ----------------------------------------------------------------------------
# Deterministic parameter init (weights stored in their kernel-friendly layout
# once here: conv weights as (k, Cin, Cout), GRU weights pre-transposed/stacked)
# ----------------------------------------------------------------------------
def init_qan_params(key, vocab_size, emb, hid):
    keys = iter(jax.random.split(key, 256))
    nk = lambda: next(keys)
    u = lambda shape, s=0.1: jax.random.uniform(nk(), shape, jnp.float32, -s, s)

    def emb_wrap(in_dim, out_dim, layers=2):
        return {'proj_w': u((in_dim, out_dim)), 'proj_b': u((out_dim,)),
                'highway': [{'w_gl': u((out_dim, 2 * out_dim)),
                             'b_gl': u((2 * out_dim,))}
                            for _ in range(layers)]}

    def enc_block(ch, k, conv_num):
        return {'convs': [{'w': u((k, ch, ch)), 'b': u((1, ch)),
                           'ln_g': jnp.ones((1, ch), jnp.float32),
                           'ln_b': jnp.zeros((1, ch), jnp.float32)}
                          for _ in range(conv_num)]}

    return {
        'embedding': u((vocab_size + 1, emb)),
        'a_emb_wrap': emb_wrap(emb, emb),
        'q_emb_wrap': emb_wrap(emb, hid),
        'p_emb_wrap': emb_wrap(emb, hid),
        'a_encoder': enc_block(emb, 7, 4),
        'q_encoder': enc_block(hid, 7, 4),
        'd_encoder': enc_block(hid, 7, 4),
        'q_conv_projector': {'w': u((5, hid, 2 * hid)), 'b': u((1, 2 * hid))},
        'qp_projector': {'w': u((5, 4 * hid, 2 * hid)), 'b': u((1, 2 * hid))},
        'a_attention_w': u((emb,)),
        'cq_att': {'w_c': u((hid,)), 'w_q': u((hid,)), 'w_m': u((hid,))},
        'gru': {'w_ih_cat': u((2 * hid, 6 * hid)),       # [fwd | bwd] stacked
                'b_ih': u((2, 3 * hid)),
                'w_hh_t': u((2, hid, 3 * hid)),
                'b_hh': u((2, 3 * hid))},
        'pred': {'w': u((4 * hid, emb)), 'b': u((emb,))},
    }


if __name__ == "__main__":
    VOCAB, EMB, HID = 50, 32, 32     # vocab_size, emb_size, hidden_size
    B, LQ, LP, LA = 2, 8, 16, 6      # batch, query len, passage len, answer len

    key = jax.random.PRNGKey(0)
    kp, kq, kpp, ka, ki = jax.random.split(key, 5)
    params = init_qan_params(kp, VOCAB, EMB, HID)

    query = jax.random.randint(kq, (B, LQ), 0, VOCAB + 1)
    passage = jax.random.randint(kpp, (B, LP), 0, VOCAB + 1)
    answer = jax.random.randint(ka, (B, 3, LA), 0, VOCAB + 1)
    ids = jax.random.randint(ki, (B,), 0, 3)

    loss = qan_forward(params, query, passage, answer, ids,
                       is_train=True, is_argmax=False)
    jax.block_until_ready(loss)
    assert loss.shape == () and jnp.isfinite(loss)
    print("KERNEL_OK")
</pallas_src>

<mosaic_0001>
module attributes {stable_mosaic.version = 11 : i64} {
  func.func @_matmul_kernel(%arg0: i32, %arg1: i32, %arg2: i32, %arg3: memref<16x32xbf16, #tpu.memory_space<vmem>>, %arg4: memref<32x32xbf16, #tpu.memory_space<vmem>>, %arg5: memref<16x32xbf16, #tpu.memory_space<vmem>>, %arg6: memref<16x32xf32, #tpu.memory_space<vmem>>) attributes {dimension_semantics = [#tpu.dimension_semantics<parallel>, #tpu.dimension_semantics<parallel>, #tpu.dimension_semantics<arbitrary>], iteration_bounds = array<i64: 1, 1, 1>, scalar_prefetch = 0 : i64, scratch_operands = 1 : i64, tpu.core_type = #tpu.core_type<tc>, window_params = [{transform_indices = @transform_0, window_bounds = array<i64: 16, 32>}, {transform_indices = @transform_1, window_bounds = array<i64: 32, 32>}, {transform_indices = @transform_2, window_bounds = array<i64: 16, 32>}]} {
    %c0_i32 = arith.constant 0 : i32
    %0 = arith.cmpi eq, %arg2, %c0_i32 : i32
    %1 = arith.extui %0 : i1 to i32
    %c0_i32_0 = arith.constant 0 : i32
    %2 = arith.cmpi ne, %1, %c0_i32_0 : i32
    scf.if %2 {
      %cst_10 = arith.constant 0.000000e+00 : f32
      %12 = vector.broadcast %cst_10 : f32 to vector<16x32xf32>
      %c0_11 = arith.constant 0 : index
      %c0_12 = arith.constant 0 : index
      %13 = vector.load %arg6[%c0_11, %c0_12] : memref<16x32xf32, #tpu.memory_space<vmem>>, vector<16x32xf32>
      tpu.vector_store %arg6[%c0_11, %c0_12], %12 {strides = array<i32>} : memref<16x32xf32, #tpu.memory_space<vmem>>, vector<16x32xf32>,
    } else {
    }
    %c0 = arith.constant 0 : index
    %c0_1 = arith.constant 0 : index
    %3 = vector.load %arg3[%c0, %c0_1] : memref<16x32xbf16, #tpu.memory_space<vmem>>, vector<16x32xbf16>
    %c0_2 = arith.constant 0 : index
    %c0_3 = arith.constant 0 : index
    %4 = vector.load %arg6[%c0_2, %c0_3] : memref<16x32xf32, #tpu.memory_space<vmem>>, vector<16x32xf32>
    %c0_4 = arith.constant 0 : index
    %c0_5 = arith.constant 0 : index
    %5 = vector.load %arg4[%c0_4, %c0_5] : memref<32x32xbf16, #tpu.memory_space<vmem>>, vector<32x32xbf16>
    %cst = arith.constant dense<0.000000e+00> : vector<16x32xf32>
    %6 = tpu.matmul %3, %5, %cst {dimension_numbers = #tpu.dot_dimension_numbers<[1], [0], [0], [1], [0, 0, 1, 1], [], []>} : vector<16x32xbf16>, vector<32x32xbf16>, vector<16x32xf32> -> vector<16x32xf32>
    %7 = arith.addf %4, %6 : vector<16x32xf32>
    %c0_6 = arith.constant 0 : index
    %c0_7 = arith.constant 0 : index
    %8 = vector.load %arg6[%c0_6, %c0_7] : memref<16x32xf32, #tpu.memory_space<vmem>>, vector<16x32xf32>
    tpu.vector_store %arg6[%c0_6, %c0_7], %7 {strides = array<i32>} : memref<16x32xf32, #tpu.memory_space<vmem>>, vector<16x32xf32>,
    %c0_i32_8 = arith.constant 0 : i32
    %9 = arith.cmpi eq, %arg2, %c0_i32_8 : i32
    %10 = arith.extui %9 : i1 to i32
    %c0_i32_9 = arith.constant 0 : i32
    %11 = arith.cmpi ne, %10, %c0_i32_9 : i32
    scf.if %11 {
      %c0_10 = arith.constant 0 : index
      %c0_11 = arith.constant 0 : index
      %12 = vector.load %arg6[%c0_10, %c0_11] : memref<16x32xf32, #tpu.memory_space<vmem>>, vector<16x32xf32>
      %13 = arith.truncf %12 : vector<16x32xf32> to vector<16x32xbf16>
      %c0_12 = arith.constant 0 : index
      %c0_13 = arith.constant 0 : index
      %14 = vector.load %arg5[%c0_12, %c0_13] : memref<16x32xbf16, #tpu.memory_space<vmem>>, vector<16x32xbf16>
      tpu.vector_store %arg5[%c0_12, %c0_13], %13 {strides = array<i32>} : memref<16x32xbf16, #tpu.memory_space<vmem>>, vector<16x32xbf16>,
    } else {
    }
    return
  }
  func.func @transform_0(%arg0: i32, %arg1: i32, %arg2: i32) -> (i32, i32) {
    %c0_i32 = arith.constant 0 : i32
    return %arg0, %arg2 : i32, i32
  }
  func.func @transform_1(%arg0: i32, %arg1: i32, %arg2: i32) -> (i32, i32) {
    %c0_i32 = arith.constant 0 : i32
    return %arg2, %arg1 : i32, i32
  }
  func.func @transform_2(%arg0: i32, %arg1: i32, %arg2: i32) -> (i32, i32) {
    %c0_i32 = arith.constant 0 : i32
    return %arg0, %arg1 : i32, i32
  }
}

</mosaic_0001>

<llo_original>
// kernel: tpu_custom_call.1
$region0: #{tpu_custom_call.1}
  #allocation0 [shape = 'u32[]', space=smem, size = 0x4, offset = 0x4, fixed_abs, tag = 'smem constant byte address 0x4 - core index']
  #allocation1 [shape = 'u32[144,128]{1,0:T(1,128)}', space=vmem, size = 0x12000, scoped, tag = 'internal scratch']
  #allocation2 [shape = 'f32[16,32]{1,0:T(8,128)}', space=vmem, size = 0x2000, scoped, tag = 'scratch operand']
  %s0 = inlined_call_operand.hbm [shape: bf16[16,32], index: 0, kind: input, shape index: {}]
  %s1 = inlined_call_operand.hbm [shape: bf16[32,32], index: 1, kind: input, shape index: {}]
  %s2 = inlined_call_operand.hbm [shape: bf16[16,32], index: 2, kind: output, shape index: {}]
  %s3 = sld [smem:[#allocation0]]
  $region34: #{tpu_custom_call.1} parent=0
    _
  %s5 = ssub.s32 1, %s3
  %s6 = scalar_select 0, %s5, %s3
  $region1: #{tpu_custom_call.1} parent=0
    #allocation3 [shape = 'u8[4096]{0}', space=vmem, size = 0x1000, scoped, tag = 'input window, operand 0, single buffered']
    #allocation4 [shape = 's32[1]{0}', space=sflag, size = 0x4, scoped, tag = 'scoped memory for tpu_custom_call.1']
    #allocation5 [shape = 's32[1]{0}', space=sflag, size = 0x4, scoped, tag = 'scoped memory for tpu_custom_call.1']
    #allocation6 [shape = 'u8[8192]{0}', space=vmem, size = 0x2000, scoped, tag = 'input window, operand 1, single buffered']
    #allocation7 [shape = 's32[1]{0}', space=sflag, size = 0x4, scoped, tag = 'scoped memory for tpu_custom_call.1']
    #allocation8 [shape = 'u8[4096]{0}', space=vmem, size = 0x1000, scoped, tag = 'output window, operand 0, single buffered']
    %7 = vsyncpa [#allocation4], 0
    %8 = vsyncpa [#allocation7], 0
    %9 = vsyncpa [#allocation5], 0
    // Predicated region
    $region2: #{tpu_custom_call.1} parent=1 // pred_check
      _
    $region3: #{tpu_custom_call.1} parent=1 // pred_check_branch
      %11 = sbr.rel (0) target = $region5
    $region4: #{tpu_custom_call.1} parent=1 // pred_region
      %s13 = ssub.s32 128, 128
      %14 = vsyncadd [#allocation4], %s13
      %s15 = sshll.u32 [#allocation3], 4
      %s16 = int_to_ptr.vmem [resolvable:$true] %s15
      %21 = dma.hbm_to_vmem [thread:$0]  %s0, 128, %s16, [#allocation4], 64, 64, 4
    $region5: #{tpu_custom_call.1} parent=1 // pred_fallthru
      _
    // Predicated region
    $region6: #{tpu_custom_call.1} parent=1 // pred_check
      _
    $region7: #{tpu_custom_call.1} parent=1 // pred_check_branch
      %23 = sbr.rel (0) target = $region9
    $region8: #{tpu_custom_call.1} parent=1 // pred_region
      %s25 = ssub.s32 256, 256
      %26 = vsyncadd [#allocation7], %s25
      %s27 = sshll.u32 [#allocation6], 4
      %s28 = int_to_ptr.vmem [resolvable:$true] %s27
      %33 = dma.hbm_to_vmem [thread:$0]  %s1, 256, %s28, [#allocation7], 64, 64, 4
    $region9: #{tpu_custom_call.1} parent=1 // pred_fallthru
      _
    // Predicated region
    $region10: #{tpu_custom_call.1} parent=1 // pred_check
      _
    $region11: #{tpu_custom_call.1} parent=1 // pred_check_branch
      %35 = sbr.rel (0) target = $region13
    $region12: #{tpu_custom_call.1} parent=1 // pred_region
      %36 = dma.done [#allocation4], 128
    $region13: #{tpu_custom_call.1} parent=1 // pred_fallthru
      _
    // Predicated region
    $region14: #{tpu_custom_call.1} parent=1 // pred_check
      _
    $region15: #{tpu_custom_call.1} parent=1 // pred_check_branch
      %38 = sbr.rel (0) target = $region17
    $region16: #{tpu_custom_call.1} parent=1 // pred_region
      %39 = dma.done [#allocation7], 256
    $region17: #{tpu_custom_call.1} parent=1 // pred_fallthru
      _
    %p41 = scmp.eq.s32.totalorder 0, 0
    // Predicated region
    $region18: #{tpu_custom_call.1} parent=1 // pred_check
      %p42 = pneg %p41
    $region19: #{tpu_custom_call.1} parent=1 // pred_check_branch
      %44 = sbr.rel (%p42) target = $region21
    $region20: #{tpu_custom_call.1} parent=1 // pred_region
      %vm45 = vcmask 261120
      %46 = vst.msk [vmem:[#allocation2] sm:$0xff] %vm45, 0.0
      %47 = vst.msk [vmem:[#allocation2 + $0x8] sm:$0xff] %vm45, 0.0
    $region21: #{tpu_custom_call.1} parent=1 // pred_fallthru
      _
    %v48 = vld [vmem:[#allocation3] sm:$0xf]
    %v49 = vld [vmem:[#allocation3 + $0x4] sm:$0xf]
    %v50 = vld [vmem:[#allocation2] sm:$0xff]
    %v51 = vld [vmem:[#allocation2 + $0x8] sm:$0xff]
    %v52 = vld [vmem:[#allocation6] sm:$0xf]
    %v53 = vld [vmem:[#allocation6 + $0x4] sm:$0xf]
    %v54 = vld [vmem:[#allocation6 + $0x8] sm:$0xf]
    %v55 = vld [vmem:[#allocation6 + $0xc] sm:$0xf]
    %v58 = vunpack.c.l.b16 %v48
    %v59 = vunpack.c.l.b16 %v49
    %v60 = vpack.c.b16 %v59, %v58
    %v65 = vunpack.c.l.b16 %v52
    %v66 = vunpack.c.l.b16 %v53
    %v67 = vunpack.c.l.b16 %v54
    %v68 = vunpack.c.l.b16 %v55
    %v69 = vpack.c.b16 %v66, %v65
    %v70 = vpack.c.b16 %v68, %v67
    %vm73 = vcmask 261120
    %v75 = vsel %vm73, %v60, 0
    %77 = vmatprep.subr.bf16.mxu0 0
    %78 = vmatpush1.bf16.msra.mxu0 %v69
    %79 = vmatprep.subr.bf16.mxu0 0
    %80 = vmatpush1.bf16.msra.mxu0 %v70
    %81 = vmatprep.subr.bf16.mxu0 0
    %82 = vmatpush1.bf16.msra.mxu0 0
    %83 = vmatprep.subr.bf16.mxu0 0
    %84 = vmatpush1.bf16.msra.mxu0 0
    %85 = vmatprep.subr.bf16.mxu0 0
    %86 = vmatpush1.bf16.msra.mxu0 0
    %87 = vmatprep.subr.bf16.mxu0 0
    %88 = vmatpush1.bf16.msra.mxu0 0
    %89 = vmatprep.subr.bf16.mxu0 0
    %90 = vmatpush1.bf16.msra.mxu0 0
    %91 = vmatprep.subr.bf16.mxu0 0
    %92 = vmatpush1.bf16.msra.mxu0 0
    %93 = vmatprep.subr.bf16.mxu0 0
    %94 = vmatpush1.bf16.msra.mxu0 0
    %95 = vmatprep.subr.bf16.mxu0 0
    %96 = vmatpush1.bf16.msra.mxu0 0
    %97 = vmatprep.subr.bf16.mxu0 0
    %98 = vmatpush1.bf16.msra.mxu0 0
    %99 = vmatprep.subr.bf16.mxu0 0
    %100 = vmatpush1.bf16.msra.mxu0 0
    %101 = vmatprep.subr.bf16.mxu0 0
    %102 = vmatpush1.bf16.msra.mxu0 0
    %103 = vmatprep.subr.bf16.mxu0 0
    %104 = vmatpush1.bf16.msra.mxu0 0
    %105 = vmatprep.subr.bf16.mxu0 0
    %106 = vmatpush1.bf16.msra.mxu0 0
    %107 = vmatprep.subr.bf16.mxu0 0
    %108 = vmatpush1.bf16.msra.mxu0 0
    %109 = vmatprep.mubr.bf16.mxu0 0
    %110 = vmatmul.mubr.bf16.gmra.mrb[0].mxu0 %v75
    %v111 = vpop.f32.mrb[0].mxu0
    %v112 = vadd.f32 0.0, %v111
    %v113 = vpop.f32.mrb[0].mxu0
    %v114 = vpop.f32.mrb[0].mxu0
    %v115 = vadd.f32 0.0, %v114
    %v116 = vpop.f32.mrb[0].mxu0
    %117 = vdwg.mxu0
    %v118 = vadd.f32 %v50, %v112
    %v119 = vadd.f32 %v51, %v115
    %120 = vst.msk [vmem:[#allocation2] sm:$0xff] %vm73, %v118
    %121 = vst.msk [vmem:[#allocation2 + $0x8] sm:$0xff] %vm73, %v119
    // Predicated region
    $region22: #{tpu_custom_call.1} parent=1 // pred_check
      %p122 = pneg %p41
    $region23: #{tpu_custom_call.1} parent=1 // pred_check_branch
      %124 = sbr.rel (%p122) target = $region25
    $region24: #{tpu_custom_call.1} parent=1 // pred_region
      %v125 = vld [vmem:[#allocation2] sm:$0xff]
      %v126 = vld [vmem:[#allocation2 + $0x8] sm:$0xff]
      %v127 = vpack.c.bf16 %v126, %v125
      %v129 = vunpack.c.l.b16 %v127
      %v130 = vunpack.c.h.b16 %v127
      %v131 = vpack.c.b16 %v129, %v129
      %v132 = vpack.c.b16 %v130, %v130
      %vm135 = vcmask 257024
      %136 = vst.msk [vmem:[#allocation8] sm:$0xf] %vm135, %v131
      %137 = vst.msk [vmem:[#allocation8 + $0x4] sm:$0xf] %vm135, %v132
    $region25: #{tpu_custom_call.1} parent=1 // pred_fallthru
      _
    // Predicated region
    $region26: #{tpu_custom_call.1} parent=1 // pred_check
      _
    $region27: #{tpu_custom_call.1} parent=1 // pred_check_branch
      %139 = sbr.rel (0) target = $region29
    $region28: #{tpu_custom_call.1} parent=1 // pred_region
      %s141 = ssub.s32 128, 128
      %142 = vsyncadd [#allocation5], %s141
      %s143 = sshll.u32 [#allocation8], 4
      %s144 = int_to_ptr.vmem [resolvable:$true] %s143
      %149 = dma.vmem_to_hbm [thread:$0]  %s144, 128, %s2, [#allocation5], 64, 64, 4
    $region29: #{tpu_custom_call.1} parent=1 // pred_fallthru
      _
    // Predicated region
    $region30: #{tpu_custom_call.1} parent=1 // pred_check
      _
    $region31: #{tpu_custom_call.1} parent=1 // pred_check_branch
      %151 = sbr.rel (0) target = $region33
    $region32: #{tpu_custom_call.1} parent=1 // pred_region
      %152 = dma.done [#allocation5], 128
    $region33: #{tpu_custom_call.1} parent=1 // pred_fallthru
      _
    %153 = vsyncpa [#allocation4], 1
    %154 = vsyncpa [#allocation7], 1
    %155 = vsyncpa [#allocation5], 1

</llo_original>
